<compile_context>
chip_gen: v5e
topology: v5e:2x2
jax: 0.10.0
libtpu: 0.0.40
codegen_flags: <defaults>
</compile_context>

<pallas_src>
import jax
import jax.numpy as jnp
from jax.experimental import pallas as pl
from jax.experimental.pallas import tpu as pltpu


def _round_up(x, m):
    return (x + m - 1) // m * m


def _ctx_attn_kernel(tok_ref,    # [TB, Sp]     int32 token ids (batch tile)
                     len_ref,    # [TB, 1]      int32 sequence lengths
                     glove_ref,  # [Vp, Ep]     f32   padded embedding table (resident)
                     w1_ref,     # [3, Ep, Hp]  f32   first-layer weights (query, value, cls)
                     b1_ref,     # [3, 1,  Hp]  f32   first-layer biases
                     w2_ref,     # [2, Hp, Ep]  f32   second-layer weights (query, value)
                     b2_ref,     # [2, 1,  Ep]  f32   second-layer biases
                     cw2_ref,    # [Hp, Op]     f32   classifier second-layer weight
                     cb2_ref,    # [1, Op]      f32   classifier second-layer bias
                     out_ref,    # [TB, Op]     classifier output (lane-padded)
                     alpha_ref): # [TB, Sp]     attention weights
    TB, S = tok_ref.shape
    Vp, E = glove_ref.shape
    H = w1_ref.shape[2]

    lens_i = len_ref[...]                                        # [TB, 1] int32
    lens_f = jnp.maximum(lens_i.astype(jnp.float32), 1.0)

    # ---- fused embedding gather: one-hot(token) @ glove on the MXU --------
    tok = tok_ref[...]                                           # [TB, S]
    vpos = jax.lax.broadcasted_iota(jnp.int32, (TB, S, Vp), 2)
    onehot = (vpos == tok[:, :, None]).astype(jnp.float32)       # [TB, S, Vp]
    xr = jnp.dot(onehot.reshape(TB * S, Vp), glove_ref[...],
                 preferred_element_type=jnp.float32)             # [TB*S, E]
    x = xr.reshape(TB, S, E)                                     # [TB, S, E]

    # ---- validity mask & masked mean over the sequence ---------------------
    pos = jax.lax.broadcasted_iota(jnp.int32, (TB, S), 1)
    mask = pos < lens_i                                          # [TB, S]
    maskf = mask.astype(jnp.float32)
    mean = jnp.sum(x * maskf[:, :, None], axis=1) / lens_f       # [TB, E]

    # ---- query MLP on the mean embedding -----------------------------------
    qh = jnp.maximum(
        jnp.dot(mean, w1_ref[0], preferred_element_type=jnp.float32) + b1_ref[0],
        0.0)
    q = jnp.dot(qh, w2_ref[0], preferred_element_type=jnp.float32) + b2_ref[0]

    # ---- attention logits, masked, numerically stable softmax --------------
    logits = jnp.sum(x * q[:, None, :], axis=2)                  # [TB, S]
    logits = jnp.where(mask, logits, jnp.float32(-1e30))
    m = jnp.max(logits, axis=1, keepdims=True)
    e = jnp.exp(logits - m)
    alpha = e / jnp.sum(e, axis=1, keepdims=True)                # [TB, S]

    # ---- value path, reordered: attention-sum the hidden activations, then
    # ---- apply the H->E layer once per example (sum_s alpha_s == 1) --------
    vh = jnp.maximum(
        jnp.dot(xr, w1_ref[1], preferred_element_type=jnp.float32) + b1_ref[1],
        0.0)                                                     # [TB*S, H]
    th = jnp.sum(alpha[:, :, None] * vh.reshape(TB, S, H), axis=1)   # [TB, H]
    t_hat = jnp.dot(th, w2_ref[1], preferred_element_type=jnp.float32) + b2_ref[1]

    # ---- classifier MLP -----------------------------------------------------
    ch = jnp.maximum(
        jnp.dot(t_hat, w1_ref[2], preferred_element_type=jnp.float32) + b1_ref[2],
        0.0)
    out = jnp.dot(ch, cw2_ref[...], preferred_element_type=jnp.float32) + cb2_ref[...]

    out_ref[...] = out
    alpha_ref[...] = alpha


def _choose_batch_tile(B, batch_tile):
    """Pick a batch tile (multiple of 8); prefer >= 2 grid steps (v7x: 2 TCs)."""
    tb = max(8, min(batch_tile, _round_up(max(B, 1), 8)))
    tb = (tb // 8) * 8
    bp = _round_up(max(B, 1), tb)
    while tb >= 16 and tb % 16 == 0 and bp // tb < 2:
        tb //= 2
        bp = _round_up(max(B, 1), tb)
    return tb, bp


def contextual_attention_forward(X, lengths, glove, params, *, batch_tile=64):
    """X: [B, S] int tokens, lengths: [B] int, glove: [V, E] float32."""
    B, S = X.shape
    V, E = glove.shape
    H = params["q_b1"].shape[0]
    O = params["c_b2"].shape[0]

    # Lane dims (E, H, O, V) pad to 128; the sequence dim only needs sublane
    # (8) alignment because it is never the last dim of a block.
    Sp = _round_up(S, 8)
    Ep = _round_up(E, 128)
    Hp = _round_up(H, 128)
    Op = _round_up(O, 128)
    Vp = _round_up(V, 128)

    TB, Bp = _choose_batch_tile(B, batch_tile)

    f32 = jnp.float32

    def pad2(a, r, c):
        a = jnp.asarray(a, f32)
        return jnp.zeros((r, c), f32).at[:a.shape[0], :a.shape[1]].set(a)

    # Stacked, lane-padded weights (constant block index -> resident in VMEM).
    w1s = jnp.stack([pad2(params["q_w1"], Ep, Hp),
                     pad2(params["v_w1"], Ep, Hp),
                     pad2(params["c_w1"], Ep, Hp)])                      # [3, Ep, Hp]
    b1s = jnp.stack([pad2(params["q_b1"].reshape(1, -1), 1, Hp),
                     pad2(params["v_b1"].reshape(1, -1), 1, Hp),
                     pad2(params["c_b1"].reshape(1, -1), 1, Hp)])        # [3, 1, Hp]
    w2s = jnp.stack([pad2(params["q_w2"], Hp, Ep),
                     pad2(params["v_w2"], Hp, Ep)])                      # [2, Hp, Ep]
    b2s = jnp.stack([pad2(params["q_b2"].reshape(1, -1), 1, Ep),
                     pad2(params["v_b2"].reshape(1, -1), 1, Ep)])        # [2, 1, Ep]
    cw2 = pad2(params["c_w2"], Hp, Op)                                   # [Hp, Op]
    cb2 = pad2(params["c_b2"].reshape(1, -1), 1, Op)                     # [1, Op]

    glove_p = pad2(glove, Vp, Ep)                                        # [Vp, Ep]

    # Pad tokens / lengths; padded batch rows get length 1 (no NaNs), padded
    # sequence positions are masked out of the mean and softmax.
    Xp = jnp.zeros((Bp, Sp), jnp.int32).at[:B, :S].set(X.astype(jnp.int32))
    lens_p = jnp.ones((Bp,), jnp.int32).at[:B].set(lengths.astype(jnp.int32))
    lens_col = lens_p.reshape(Bp, 1)

    grid = (Bp // TB,)

    in_specs = [
        pl.BlockSpec((TB, Sp), lambda b: (b, 0)),              # token ids
        pl.BlockSpec((TB, 1), lambda b: (b, 0)),               # lengths
        pl.BlockSpec((Vp, Ep), lambda b: (0, 0)),              # embedding table (resident)
        pl.BlockSpec((3, Ep, Hp), lambda b: (0, 0, 0)),        # w1 stack
        pl.BlockSpec((3, 1, Hp), lambda b: (0, 0, 0)),         # b1 stack
        pl.BlockSpec((2, Hp, Ep), lambda b: (0, 0, 0)),        # w2 stack (query, value)
        pl.BlockSpec((2, 1, Ep), lambda b: (0, 0, 0)),         # b2 stack
        pl.BlockSpec((Hp, Op), lambda b: (0, 0)),              # classifier w2
        pl.BlockSpec((1, Op), lambda b: (0, 0)),               # classifier b2
    ]
    out_shapes = (jax.ShapeDtypeStruct((Bp, Op), f32),
                  jax.ShapeDtypeStruct((Bp, Sp), f32))
    out_specs = (pl.BlockSpec((TB, Op), lambda b: (b, 0)),
                 pl.BlockSpec((TB, Sp), lambda b: (b, 0)))

    out_p, alpha_p = pl.pallas_call(
        _ctx_attn_kernel,
        out_shape=out_shapes,
        grid_spec=pltpu.PrefetchScalarGridSpec(
            num_scalar_prefetch=0,
            grid=grid,
            in_specs=in_specs,
            out_specs=out_specs,
        ),
        compiler_params=pltpu.CompilerParams(
            dimension_semantics=("parallel",),       # batch tiles are independent
            vmem_limit_bytes=32 * 1024 * 1024,       # safe on v5e/v6e/v7x at these block sizes
        ),
    )(Xp, lens_col, glove_p, w1s, b1s, w2s, b2s, cw2, cb2)

    return out_p[:B, :O], alpha_p[:B, :S]


def reference_forward(X, lengths, glove, params):
    """Pure-JAX mirror of the PyTorch forward, for verification."""
    x_emb = jnp.take(glove, X, axis=0).astype(jnp.float32)
    B, S, E = x_emb.shape
    mask = jnp.arange(S)[None, :] < lengths[:, None]
    xm = jnp.where(mask[:, :, None], x_emb, 0.0)
    mean = xm.sum(1) / lengths[:, None].astype(jnp.float32)

    def mlp(z, w1, b1, w2, b2):
        return jnp.maximum(z @ w1 + b1, 0.0) @ w2 + b2

    q = mlp(mean, params["q_w1"], params["q_b1"], params["q_w2"], params["q_b2"])
    alpha = jnp.einsum("be,bse->bs", q, x_emb)
    alpha = jnp.where(mask, alpha, -jnp.inf)
    alpha = jax.nn.softmax(alpha, axis=1)
    v = mlp(x_emb, params["v_w1"], params["v_b1"], params["v_w2"], params["v_b2"])
    t_hat = (alpha[:, :, None] * v).sum(1)
    out = mlp(t_hat, params["c_w1"], params["c_b1"], params["c_w2"], params["c_b2"])
    return out, alpha


def init_params(key, emb_dim, dim_hidden, dim_output):
    """Deterministic, PyTorch-nn.Linear-like uniform init; weights are [in, out]."""
    ks = jax.random.split(key, 12)

    def lin(kw, kb, fan_in, fan_out):
        bound = 1.0 / (fan_in ** 0.5)
        w = jax.random.uniform(kw, (fan_in, fan_out), jnp.float32, -bound, bound)
        b = jax.random.uniform(kb, (fan_out,), jnp.float32, -bound, bound)
        return w, b

    p = {}
    p["c_w1"], p["c_b1"] = lin(ks[0], ks[1], emb_dim, dim_hidden)
    p["c_w2"], p["c_b2"] = lin(ks[2], ks[3], dim_hidden, dim_output)
    p["v_w1"], p["v_b1"] = lin(ks[4], ks[5], emb_dim, dim_hidden)
    p["v_w2"], p["v_b2"] = lin(ks[6], ks[7], dim_hidden, emb_dim)
    p["q_w1"], p["q_b1"] = lin(ks[8], ks[9], emb_dim, dim_hidden)
    p["q_w2"], p["q_b2"] = lin(ks[10], ks[11], dim_hidden, emb_dim)
    return p


if __name__ == "__main__":
    VOCAB, EMB, HID, OUT = 20, 32, 32, 4
    B, S = 2, 8

    key = jax.random.PRNGKey(0)
    k_glove, k_tok, k_params = jax.random.split(key, 3)

    glove = jax.random.normal(k_glove, (VOCAB, EMB), jnp.float32)
    X = jax.random.randint(k_tok, (B, S), 0, VOCAB, dtype=jnp.int32)
    lengths = jnp.array([5, 8], dtype=jnp.int32)
    params = init_params(k_params, EMB, HID, OUT)

    out, alpha = contextual_attention_forward(X, lengths, glove, params)
    jax.block_until_ready((out, alpha))

    ref_out, ref_alpha = reference_forward(X, lengths, glove, params)
    assert out.shape == (B, OUT) and alpha.shape == (B, S)
    assert jnp.allclose(out, ref_out, atol=1e-4, rtol=1e-4)
    assert jnp.allclose(alpha, ref_alpha, atol=1e-4, rtol=1e-4)

    print("KERNEL_OK")
</pallas_src>

<mosaic_0001>
module attributes {stable_mosaic.version = 11 : i64} {
  func.func @_ctx_attn_kernel(%arg0: i32, %arg1: memref<8x8xi32, #tpu.memory_space<vmem>>, %arg2: memref<8x1xi32, #tpu.memory_space<vmem>>, %arg3: memref<128x128xf32, #tpu.memory_space<vmem>>, %arg4: memref<3x128x128xf32, #tpu.memory_space<vmem>>, %arg5: memref<3x1x128xf32, #tpu.memory_space<vmem>>, %arg6: memref<2x128x128xf32, #tpu.memory_space<vmem>>, %arg7: memref<2x1x128xf32, #tpu.memory_space<vmem>>, %arg8: memref<128x128xf32, #tpu.memory_space<vmem>>, %arg9: memref<1x128xf32, #tpu.memory_space<vmem>>, %arg10: memref<8x128xf32, #tpu.memory_space<vmem>>, %arg11: memref<8x8xf32, #tpu.memory_space<vmem>>) attributes {dimension_semantics = [#tpu.dimension_semantics<parallel>], iteration_bounds = array<i64: 1>, scalar_prefetch = 0 : i64, scratch_operands = 0 : i64, tpu.core_type = #tpu.core_type<tc>, window_params = [{transform_indices = @transform_0, window_bounds = array<i64: 8, 8>}, {transform_indices = @transform_1, window_bounds = array<i64: 8, 1>}, {pipeline_mode = #tpu.pipeline_mode<synchronous>, transform_indices = @transform_2, window_bounds = array<i64: 128, 128>}, {pipeline_mode = #tpu.pipeline_mode<synchronous>, transform_indices = @transform_3, window_bounds = array<i64: 3, 128, 128>}, {pipeline_mode = #tpu.pipeline_mode<synchronous>, transform_indices = @transform_4, window_bounds = array<i64: 3, 1, 128>}, {pipeline_mode = #tpu.pipeline_mode<synchronous>, transform_indices = @transform_5, window_bounds = array<i64: 2, 128, 128>}, {pipeline_mode = #tpu.pipeline_mode<synchronous>, transform_indices = @transform_6, window_bounds = array<i64: 2, 1, 128>}, {pipeline_mode = #tpu.pipeline_mode<synchronous>, transform_indices = @transform_7, window_bounds = array<i64: 128, 128>}, {pipeline_mode = #tpu.pipeline_mode<synchronous>, transform_indices = @transform_8, window_bounds = array<i64: 1, 128>}, {transform_indices = @transform_9, window_bounds = array<i64: 8, 128>}, {transform_indices = @transform_10, window_bounds = array<i64: 8, 8>}]} {
    %c0 = arith.constant 0 : index
    %c0_0 = arith.constant 0 : index
    %0 = vector.load %arg2[%c0, %c0_0] : memref<8x1xi32, #tpu.memory_space<vmem>>, vector<8x1xi32>
    %1 = arith.sitofp %0 : vector<8x1xi32> to vector<8x1xf32>
    %cst = arith.constant 1.000000e+00 : f32
    %2 = vector.broadcast %cst : f32 to vector<8x1xf32>
    %3 = arith.maximumf %1, %2 : vector<8x1xf32>
    %c0_1 = arith.constant 0 : index
    %c0_2 = arith.constant 0 : index
    %4 = vector.load %arg1[%c0_1, %c0_2] : memref<8x8xi32, #tpu.memory_space<vmem>>, vector<8x8xi32>
    %5 = tpu.iota {dimensions = array<i32: 2>} : vector<8x8x128xi32>
    %6 = vector.shape_cast %4 : vector<8x8xi32> to vector<8x8x1xi32>
    %7 = vector.broadcast %6 : vector<8x8x1xi32> to vector<8x8x128xi32>
    %8 = arith.cmpi eq, %5, %7 : vector<8x8x128xi32>
    %9 = arith.extui %8 : vector<8x8x128xi1> to vector<8x8x128xi32>
    %10 = arith.sitofp %9 : vector<8x8x128xi32> to vector<8x8x128xf32>
    %11 = vector.shape_cast %10 : vector<8x8x128xf32> to vector<64x128xf32>
    %c0_3 = arith.constant 0 : index
    %c0_4 = arith.constant 0 : index
    %12 = vector.load %arg3[%c0_3, %c0_4] : memref<128x128xf32, #tpu.memory_space<vmem>>, vector<128x128xf32>
    %cst_5 = arith.constant dense<0.000000e+00> : vector<64x128xf32>
    %13 = tpu.matmul %11, %12, %cst_5 {dimension_numbers = #tpu.dot_dimension_numbers<[1], [0], [0], [1], [0, 0, 1, 1], [], []>} : vector<64x128xf32>, vector<128x128xf32>, vector<64x128xf32> -> vector<64x128xf32>
    %14 = vector.shape_cast %13 : vector<64x128xf32> to vector<8x8x128xf32>
    %15 = tpu.iota {dimensions = array<i32: 1>} : vector<8x8xi32>
    %16 = vector.broadcast %0 : vector<8x1xi32> to vector<8x8xi32>
    %17 = arith.cmpi slt, %15, %16 : vector<8x8xi32>
    %18 = arith.extui %17 : vector<8x8xi1> to vector<8x8xi32>
    %19 = arith.sitofp %18 : vector<8x8xi32> to vector<8x8xf32>
    %20 = vector.shape_cast %19 : vector<8x8xf32> to vector<8x8x1xf32>
    %21 = vector.broadcast %20 : vector<8x8x1xf32> to vector<8x8x128xf32>
    %22 = arith.mulf %14, %21 : vector<8x8x128xf32>
    %cst_6 = arith.constant dense<0.000000e+00> : vector<8x128xf32>
    %23 = vector.multi_reduction <add>, %22, %cst_6 [1] : vector<8x8x128xf32> to vector<8x128xf32>
    %24 = vector.broadcast %3 : vector<8x1xf32> to vector<8x128xf32>
    %25 = arith.divf %23, %24 : vector<8x128xf32>
    %c0_7 = arith.constant 0 : index
    %c0_8 = arith.constant 0 : index
    %c0_9 = arith.constant 0 : index
    %26 = vector.load %arg4[%c0_7, %c0_8, %c0_9] : memref<3x128x128xf32, #tpu.memory_space<vmem>>, vector<1x128x128xf32>
    %27 = vector.shape_cast %26 : vector<1x128x128xf32> to vector<128x128xf32>
    %cst_10 = arith.constant dense<0.000000e+00> : vector<8x128xf32>
    %28 = tpu.matmul %25, %27, %cst_10 {dimension_numbers = #tpu.dot_dimension_numbers<[1], [0], [0], [1], [0, 0, 1, 1], [], []>} : vector<8x128xf32>, vector<128x128xf32>, vector<8x128xf32> -> vector<8x128xf32>
    %c0_11 = arith.constant 0 : index
    %c0_12 = arith.constant 0 : index
    %c0_13 = arith.constant 0 : index
    %29 = vector.load %arg5[%c0_11, %c0_12, %c0_13] : memref<3x1x128xf32, #tpu.memory_space<vmem>>, vector<1x1x128xf32>
    %30 = vector.shape_cast %29 : vector<1x1x128xf32> to vector<1x128xf32>
    %31 = vector.broadcast %30 : vector<1x128xf32> to vector<8x128xf32>
    %32 = arith.addf %28, %31 : vector<8x128xf32>
    %cst_14 = arith.constant 0.000000e+00 : f32
    %33 = vector.broadcast %cst_14 : f32 to vector<8x128xf32>
    %34 = arith.maximumf %32, %33 : vector<8x128xf32>
    %c0_15 = arith.constant 0 : index
    %c0_16 = arith.constant 0 : index
    %c0_17 = arith.constant 0 : index
    %35 = vector.load %arg6[%c0_15, %c0_16, %c0_17] : memref<2x128x128xf32, #tpu.memory_space<vmem>>, vector<1x128x128xf32>
    %36 = vector.shape_cast %35 : vector<1x128x128xf32> to vector<128x128xf32>
    %cst_18 = arith.constant dense<0.000000e+00> : vector<8x128xf32>
    %37 = tpu.matmul %34, %36, %cst_18 {dimension_numbers = #tpu.dot_dimension_numbers<[1], [0], [0], [1], [0, 0, 1, 1], [], []>} : vector<8x128xf32>, vector<128x128xf32>, vector<8x128xf32> -> vector<8x128xf32>
    %c0_19 = arith.constant 0 : index
    %c0_20 = arith.constant 0 : index
    %c0_21 = arith.constant 0 : index
    %38 = vector.load %arg7[%c0_19, %c0_20, %c0_21] : memref<2x1x128xf32, #tpu.memory_space<vmem>>, vector<1x1x128xf32>
    %39 = vector.shape_cast %38 : vector<1x1x128xf32> to vector<1x128xf32>
    %40 = vector.broadcast %39 : vector<1x128xf32> to vector<8x128xf32>
    %41 = arith.addf %37, %40 : vector<8x128xf32>
    %42 = vector.shape_cast %41 : vector<8x128xf32> to vector<8x1x128xf32>
    %43 = vector.broadcast %42 : vector<8x1x128xf32> to vector<8x8x128xf32>
    %44 = arith.mulf %14, %43 : vector<8x8x128xf32>
    %cst_22 = arith.constant dense<0.000000e+00> : vector<8x8xf32>
    %45 = vector.multi_reduction <add>, %44, %cst_22 [2] : vector<8x8x128xf32> to vector<8x8xf32>
    %cst_23 = arith.constant -1.000000e+30 : f32
    %46 = vector.broadcast %cst_23 : f32 to vector<8x8xf32>
    %47 = arith.select %17, %45, %46 : vector<8x8xi1>, vector<8x8xf32>
    %cst_24 = arith.constant dense<0xFF800000> : vector<8xf32>
    %48 = vector.multi_reduction <maximumf>, %47, %cst_24 [1] : vector<8x8xf32> to vector<8xf32>
    %49 = vector.shape_cast %48 : vector<8xf32> to vector<8x1xf32>
    %50 = vector.broadcast %49 : vector<8x1xf32> to vector<8x8xf32>
    %51 = arith.subf %47, %50 : vector<8x8xf32>
    %52 = math.exp %51 : vector<8x8xf32>
    %cst_25 = arith.constant dense<0.000000e+00> : vector<8xf32>
    %53 = vector.multi_reduction <add>, %52, %cst_25 [1] : vector<8x8xf32> to vector<8xf32>
    %54 = vector.shape_cast %53 : vector<8xf32> to vector<8x1xf32>
    %55 = vector.broadcast %54 : vector<8x1xf32> to vector<8x8xf32>
    %56 = arith.divf %52, %55 : vector<8x8xf32>
    %c1 = arith.constant 1 : index
    %c0_26 = arith.constant 0 : index
    %c0_27 = arith.constant 0 : index
    %57 = vector.load %arg4[%c1, %c0_26, %c0_27] : memref<3x128x128xf32, #tpu.memory_space<vmem>>, vector<1x128x128xf32>
    %58 = vector.shape_cast %57 : vector<1x128x128xf32> to vector<128x128xf32>
    %cst_28 = arith.constant dense<0.000000e+00> : vector<64x128xf32>
    %59 = tpu.matmul %13, %58, %cst_28 {dimension_numbers = #tpu.dot_dimension_numbers<[1], [0], [0], [1], [0, 0, 1, 1], [], []>} : vector<64x128xf32>, vector<128x128xf32>, vector<64x128xf32> -> vector<64x128xf32>
    %c1_29 = arith.constant 1 : index
    %c0_30 = arith.constant 0 : index
    %c0_31 = arith.constant 0 : index
    %60 = vector.load %arg5[%c1_29, %c0_30, %c0_31] : memref<3x1x128xf32, #tpu.memory_space<vmem>>, vector<1x1x128xf32>
    %61 = vector.shape_cast %60 : vector<1x1x128xf32> to vector<1x128xf32>
    %62 = vector.broadcast %61 : vector<1x128xf32> to vector<64x128xf32>
    %63 = arith.addf %59, %62 : vector<64x128xf32>
    %cst_32 = arith.constant 0.000000e+00 : f32
    %64 = vector.broadcast %cst_32 : f32 to vector<64x128xf32>
    %65 = arith.maximumf %63, %64 : vector<64x128xf32>
    %66 = vector.shape_cast %56 : vector<8x8xf32> to vector<8x8x1xf32>
    %67 = vector.shape_cast %65 : vector<64x128xf32> to vector<8x8x128xf32>
    %68 = vector.broadcast %66 : vector<8x8x1xf32> to vector<8x8x128xf32>
    %69 = arith.mulf %68, %67 : vector<8x8x128xf32>
    %cst_33 = arith.constant dense<0.000000e+00> : vector<8x128xf32>
    %70 = vector.multi_reduction <add>, %69, %cst_33 [1] : vector<8x8x128xf32> to vector<8x128xf32>
    %c1_34 = arith.constant 1 : index
    %c0_35 = arith.constant 0 : index
    %c0_36 = arith.constant 0 : index
    %71 = vector.load %arg6[%c1_34, %c0_35, %c0_36] : memref<2x128x128xf32, #tpu.memory_space<vmem>>, vector<1x128x128xf32>
    %72 = vector.shape_cast %71 : vector<1x128x128xf32> to vector<128x128xf32>
    %cst_37 = arith.constant dense<0.000000e+00> : vector<8x128xf32>
    %73 = tpu.matmul %70, %72, %cst_37 {dimension_numbers = #tpu.dot_dimension_numbers<[1], [0], [0], [1], [0, 0, 1, 1], [], []>} : vector<8x128xf32>, vector<128x128xf32>, vector<8x128xf32> -> vector<8x128xf32>
    %c1_38 = arith.constant 1 : index
    %c0_39 = arith.constant 0 : index
    %c0_40 = arith.constant 0 : index
    %74 = vector.load %arg7[%c1_38, %c0_39, %c0_40] : memref<2x1x128xf32, #tpu.memory_space<vmem>>, vector<1x1x128xf32>
    %75 = vector.shape_cast %74 : vector<1x1x128xf32> to vector<1x128xf32>
    %76 = vector.broadcast %75 : vector<1x128xf32> to vector<8x128xf32>
    %77 = arith.addf %73, %76 : vector<8x128xf32>
    %c2 = arith.constant 2 : index
    %c0_41 = arith.constant 0 : index
    %c0_42 = arith.constant 0 : index
    %78 = vector.load %arg4[%c2, %c0_41, %c0_42] : memref<3x128x128xf32, #tpu.memory_space<vmem>>, vector<1x128x128xf32>
    %79 = vector.shape_cast %78 : vector<1x128x128xf32> to vector<128x128xf32>
    %cst_43 = arith.constant dense<0.000000e+00> : vector<8x128xf32>
    %80 = tpu.matmul %77, %79, %cst_43 {dimension_numbers = #tpu.dot_dimension_numbers<[1], [0], [0], [1], [0, 0, 1, 1], [], []>} : vector<8x128xf32>, vector<128x128xf32>, vector<8x128xf32> -> vector<8x128xf32>
    %c2_44 = arith.constant 2 : index
    %c0_45 = arith.constant 0 : index
    %c0_46 = arith.constant 0 : index
    %81 = vector.load %arg5[%c2_44, %c0_45, %c0_46] : memref<3x1x128xf32, #tpu.memory_space<vmem>>, vector<1x1x128xf32>
    %82 = vector.shape_cast %81 : vector<1x1x128xf32> to vector<1x128xf32>
    %83 = vector.broadcast %82 : vector<1x128xf32> to vector<8x128xf32>
    %84 = arith.addf %80, %83 : vector<8x128xf32>
    %cst_47 = arith.constant 0.000000e+00 : f32
    %85 = vector.broadcast %cst_47 : f32 to vector<8x128xf32>
    %86 = arith.maximumf %84, %85 : vector<8x128xf32>
    %c0_48 = arith.constant 0 : index
    %c0_49 = arith.constant 0 : index
    %87 = vector.load %arg8[%c0_48, %c0_49] : memref<128x128xf32, #tpu.memory_space<vmem>>, vector<128x128xf32>
    %cst_50 = arith.constant dense<0.000000e+00> : vector<8x128xf32>
    %88 = tpu.matmul %86, %87, %cst_50 {dimension_numbers = #tpu.dot_dimension_numbers<[1], [0], [0], [1], [0, 0, 1, 1], [], []>} : vector<8x128xf32>, vector<128x128xf32>, vector<8x128xf32> -> vector<8x128xf32>
    %c0_51 = arith.constant 0 : index
    %c0_52 = arith.constant 0 : index
    %89 = vector.load %arg9[%c0_51, %c0_52] : memref<1x128xf32, #tpu.memory_space<vmem>>, vector<1x128xf32>
    %90 = vector.broadcast %89 : vector<1x128xf32> to vector<8x128xf32>
    %91 = arith.addf %88, %90 : vector<8x128xf32>
    %c0_53 = arith.constant 0 : index
    %c0_54 = arith.constant 0 : index
    %92 = vector.load %arg10[%c0_53, %c0_54] : memref<8x128xf32, #tpu.memory_space<vmem>>, vector<8x128xf32>
    tpu.vector_store %arg10[%c0_53, %c0_54], %91 {strides = array<i32>} : memref<8x128xf32, #tpu.memory_space<vmem>>, vector<8x128xf32>,
    %c0_55 = arith.constant 0 : index
    %c0_56 = arith.constant 0 : index
    %93 = vector.load %arg11[%c0_55, %c0_56] : memref<8x8xf32, #tpu.memory_space<vmem>>, vector<8x8xf32>
    tpu.vector_store %arg11[%c0_55, %c0_56], %56 {strides = array<i32>} : memref<8x8xf32, #tpu.memory_space<vmem>>, vector<8x8xf32>,
    return
  }
  func.func @transform_0(%arg0: i32) -> (i32, i32) {
    %c0_i32 = arith.constant 0 : i32
    %c0_i32_0 = arith.constant 0 : i32
    return %arg0, %c0_i32 : i32, i32
  }
  func.func @transform_1(%arg0: i32) -> (i32, i32) {
    %c0_i32 = arith.constant 0 : i32
    %c0_i32_0 = arith.constant 0 : i32
    return %arg0, %c0_i32 : i32, i32
  }
  func.func @transform_2(%arg0: i32) -> (i32, i32) {
    %c0_i32 = arith.constant 0 : i32
    %c0_i32_0 = arith.constant 0 : i32
    %c0_i32_1 = arith.constant 0 : i32
    return %c0_i32, %c0_i32_0 : i32, i32
  }
  func.func @transform_3(%arg0: i32) -> (i32, i32, i32) {
    %c0_i32 = arith.constant 0 : i32
    %c0_i32_0 = arith.constant 0 : i32
    %c0_i32_1 = arith.constant 0 : i32
    %c0_i32_2 = arith.constant 0 : i32
    return %c0_i32, %c0_i32_0, %c0_i32_1 : i32, i32, i32
  }
  func.func @transform_4(%arg0: i32) -> (i32, i32, i32) {
    %c0_i32 = arith.constant 0 : i32
    %c0_i32_0 = arith.constant 0 : i32
    %c0_i32_1 = arith.constant 0 : i32
    %c0_i32_2 = arith.constant 0 : i32
    return %c0_i32, %c0_i32_0, %c0_i32_1 : i32, i32, i32
  }
  func.func @transform_5(%arg0: i32) -> (i32, i32, i32) {
    %c0_i32 = arith.constant 0 : i32
    %c0_i32_0 = arith.constant 0 : i32
    %c0_i32_1 = arith.constant 0 : i32
    %c0_i32_2 = arith.constant 0 : i32
    return %c0_i32, %c0_i32_0, %c0_i32_1 : i32, i32, i32
  }
  func.func @transform_6(%arg0: i32) -> (i32, i32, i32) {
    %c0_i32 = arith.constant 0 : i32
    %c0_i32_0 = arith.constant 0 : i32
    %c0_i32_1 = arith.constant 0 : i32
    %c0_i32_2 = arith.constant 0 : i32
    return %c0_i32, %c0_i32_0, %c0_i32_1 : i32, i32, i32
  }
  func.func @transform_7(%arg0: i32) -> (i32, i32) {
    %c0_i32 = arith.constant 0 : i32
    %c0_i32_0 = arith.constant 0 : i32
    %c0_i32_1 = arith.constant 0 : i32
    return %c0_i32, %c0_i32_0 : i32, i32
  }
  func.func @transform_8(%arg0: i32) -> (i32, i32) {
    %c0_i32 = arith.constant 0 : i32
    %c0_i32_0 = arith.constant 0 : i32
    %c0_i32_1 = arith.constant 0 : i32
    return %c0_i32, %c0_i32_0 : i32, i32
  }
  func.func @transform_9(%arg0: i32) -> (i32, i32) {
    %c0_i32 = arith.constant 0 : i32
    %c0_i32_0 = arith.constant 0 : i32
    return %arg0, %c0_i32 : i32, i32
  }
  func.func @transform_10(%arg0: i32) -> (i32, i32) {
    %c0_i32 = arith.constant 0 : i32
    %c0_i32_0 = arith.constant 0 : i32
    return %arg0, %c0_i32 : i32, i32
  }
}

</mosaic_0001>

<llo_original>
// kernel: tpu_custom_call.1
$region0: #{tpu_custom_call.1}
  #allocation0 [shape = 'u32[]', space=smem, size = 0x4, offset = 0x4, fixed_abs, tag = 'smem constant byte address 0x4 - core index']
  #allocation1 [shape = 'u32[72,128]{1,0:T(1,128)}', space=vmem, size = 0x9000, scoped, tag = 'internal scratch']
  %s0 = inlined_call_operand.vmem [shape: s32[8,8], index: 0, kind: input, shape index: {}]
  %s1 = inlined_call_operand.vmem [shape: s32[8,1], index: 1, kind: input, shape index: {}]
  %s2 = inlined_call_operand.hbm [shape: f32[128,128], index: 2, kind: input, shape index: {}]
  %s3 = inlined_call_operand.hbm [shape: f32[3,128,128], index: 3, kind: input, shape index: {}]
  %s4 = inlined_call_operand.vmem [shape: f32[3,1,128], index: 4, kind: input, shape index: {}]
  %s5 = inlined_call_operand.hbm [shape: f32[2,128,128], index: 5, kind: input, shape index: {}]
  %s6 = inlined_call_operand.vmem [shape: f32[2,1,128], index: 6, kind: input, shape index: {}]
  %s7 = inlined_call_operand.hbm [shape: f32[128,128], index: 7, kind: input, shape index: {}]
  %s8 = inlined_call_operand.vmem [shape: f32[1,128], index: 8, kind: input, shape index: {}]
  %s9 = inlined_call_operand.hbm [shape: f32[8,128], index: 9, kind: output, shape index: {0}]
  %s10 = inlined_call_operand.hbm [shape: f32[8,8], index: 10, kind: output, shape index: {1}]
  %11 = xla_tuple %s9, %s10
  %s12 = sld [smem:[#allocation0]]
  $region70: #{tpu_custom_call.1} parent=0
    _
  %s14 = ssub.s32 1, %s12
  %s15 = scalar_select 0, %s14, %s12
  $region1: #{tpu_custom_call.1} parent=0
    #allocation2 [shape = 'u8[65536]{0}', space=vmem, size = 0x10000, scoped, tag = 'input window, operand 2, single buffered']
    #allocation3 [shape = 's32[1]{0}', space=sflag, size = 0x4, scoped, tag = 'scoped memory for tpu_custom_call.1']
    #allocation4 [shape = 's32[1]{0}', space=sflag, size = 0x4, scoped, tag = 'scoped memory for tpu_custom_call.1']
    #allocation5 [shape = 'u8[196608]{0}', space=vmem, size = 0x30000, scoped, tag = 'input window, operand 3, single buffered']
    #allocation6 [shape = 's32[1]{0}', space=sflag, size = 0x4, scoped, tag = 'scoped memory for tpu_custom_call.1']
    #allocation7 [shape = 'u8[131072]{0}', space=vmem, size = 0x20000, scoped, tag = 'input window, operand 5, single buffered']
    #allocation8 [shape = 'u8[65536]{0}', space=vmem, size = 0x10000, scoped, tag = 'input window, operand 7, single buffered']
    #allocation9 [shape = 's32[1]{0}', space=sflag, size = 0x4, scoped, tag = 'scoped memory for tpu_custom_call.1']
    #allocation10 [shape = 'u8[4096]{0}', space=vmem, size = 0x1000, scoped, tag = 'output window, operand 0, single buffered']
    #allocation11 [shape = 'u8[4096]{0}', space=vmem, size = 0x1000, scoped, tag = 'output window, operand 1, single buffered']
    #allocation12 [shape = 's32[1]{0}', space=sflag, size = 0x4, scoped, tag = 'scoped memory for tpu_custom_call.1']
    %16 = vsyncpa [#allocation3], 0
    %17 = vsyncpa [#allocation6], 0
    %18 = vsyncpa [#allocation9], 0
    %19 = vsyncpa [#allocation4], 0
    %20 = vsyncpa [#allocation12], 0
    // Predicated region
    $region2: #{tpu_custom_call.1} parent=1 // pred_check
      _
    $region3: #{tpu_custom_call.1} parent=1 // pred_check_branch
      %22 = sbr.rel (0) target = $region5
    $region4: #{tpu_custom_call.1} parent=1 // pred_region
      _
    $region5: #{tpu_custom_call.1} parent=1 // pred_fallthru
      _
    // Predicated region
    $region6: #{tpu_custom_call.1} parent=1 // pred_check
      _
    $region7: #{tpu_custom_call.1} parent=1 // pred_check_branch
      %24 = sbr.rel (0) target = $region9
    $region8: #{tpu_custom_call.1} parent=1 // pred_region
      _
    $region9: #{tpu_custom_call.1} parent=1 // pred_fallthru
      _
    // Predicated region
    $region10: #{tpu_custom_call.1} parent=1 // pred_check
      _
    $region11: #{tpu_custom_call.1} parent=1 // pred_check_branch
      %26 = sbr.rel (0) target = $region13
    $region12: #{tpu_custom_call.1} parent=1 // pred_region
      %28 = vsyncadd [#allocation3], 0
      %s29 = sshll.u32 %s2, 4
      %s30 = int_to_ptr.hbm [resolvable:$true] %s29
      %s31 = sshll.u32 [#allocation2], 4
      %s32 = int_to_ptr.vmem [resolvable:$true] %s31
      %37 = dma.hbm_to_vmem [thread:$0]  %s30, 2048, %s32, [#allocation3], 128, 128, 8
    $region13: #{tpu_custom_call.1} parent=1 // pred_fallthru
      _
    // Predicated region
    $region14: #{tpu_custom_call.1} parent=1 // pred_check
      _
    $region15: #{tpu_custom_call.1} parent=1 // pred_check_branch
      %39 = sbr.rel (0) target = $region17
    $region16: #{tpu_custom_call.1} parent=1 // pred_region
      %41 = vsyncadd [#allocation6], 0
      %s42 = sshll.u32 %s3, 4
      %s43 = int_to_ptr.hbm [resolvable:$true] %s42
      %s44 = sshll.u32 [#allocation5], 4
      %s45 = int_to_ptr.vmem [resolvable:$true] %s44
      %50 = dma.hbm_to_vmem [thread:$0]  %s43, 6144, %s45, [#allocation6], 128, 128, 8
    $region17: #{tpu_custom_call.1} parent=1 // pred_fallthru
      _
    // Predicated region
    $region18: #{tpu_custom_call.1} parent=1 // pred_check
      _
    $region19: #{tpu_custom_call.1} parent=1 // pred_check_branch
      %52 = sbr.rel (0) target = $region21
    $region20: #{tpu_custom_call.1} parent=1 // pred_region
      _
    $region21: #{tpu_custom_call.1} parent=1 // pred_fallthru
      _
    // Predicated region
    $region22: #{tpu_custom_call.1} parent=1 // pred_check
      _
    $region23: #{tpu_custom_call.1} parent=1 // pred_check_branch
      %54 = sbr.rel (0) target = $region25
    $region24: #{tpu_custom_call.1} parent=1 // pred_region
      %56 = vsyncadd [#allocation6], 0
      %s57 = sshll.u32 %s5, 4
      %s58 = int_to_ptr.hbm [resolvable:$true] %s57
      %s59 = sshll.u32 [#allocation7], 4
      %s60 = int_to_ptr.vmem [resolvable:$true] %s59
      %65 = dma.hbm_to_vmem [thread:$0]  %s58, 4096, %s60, [#allocation6], 128, 128, 8
    $region25: #{tpu_custom_call.1} parent=1 // pred_fallthru
      _
    // Predicated region
    $region26: #{tpu_custom_call.1} parent=1 // pred_check
      _
    $region27: #{tpu_custom_call.1} parent=1 // pred_check_branch
      %67 = sbr.rel (0) target = $region29
    $region28: #{tpu_custom_call.1} parent=1 // pred_region
      _
    $region29: #{tpu_custom_call.1} parent=1 // pred_fallthru
      _
    // Predicated region
    $region30: #{tpu_custom_call.1} parent=1 // pred_check
      _
    $region31: #{tpu_custom_call.1} parent=1 // pred_check_branch
      %69 = sbr.rel (0) target = $region33
    $region32: #{tpu_custom_call.1} parent=1 // pred_region
      %71 = vsyncadd [#allocation9], 0
      %s72 = sshll.u32 %s7, 4
      %s73 = int_to_ptr.hbm [resolvable:$true] %s72
      %s74 = sshll.u32 [#allocation8], 4
      %s75 = int_to_ptr.vmem [resolvable:$true] %s74
      %80 = dma.hbm_to_vmem [thread:$0]  %s73, 2048, %s75, [#allocation9], 128, 128, 8
    $region33: #{tpu_custom_call.1} parent=1 // pred_fallthru
      _
    // Predicated region
    $region34: #{tpu_custom_call.1} parent=1 // pred_check
      _
    $region35: #{tpu_custom_call.1} parent=1 // pred_check_branch
      %82 = sbr.rel (0) target = $region37
    $region36: #{tpu_custom_call.1} parent=1 // pred_region
      _
    $region37: #{tpu_custom_call.1} parent=1 // pred_fallthru
      _
    // Predicated region
    $region38: #{tpu_custom_call.1} parent=1 // pred_check
      _
    $region39: #{tpu_custom_call.1} parent=1 // pred_check_branch
      %84 = sbr.rel (0) target = $region41
    $region40: #{tpu_custom_call.1} parent=1 // pred_region
      %86 = dma.done [#allocation3], 2048
    $region41: #{tpu_custom_call.1} parent=1 // pred_fallthru
      _
    // Predicated region
    $region42: #{tpu_custom_call.1} parent=1 // pred_check
      _
    $region43: #{tpu_custom_call.1} parent=1 // pred_check_branch
      %88 = sbr.rel (0) target = $region45
    $region44: #{tpu_custom_call.1} parent=1 // pred_region
      %90 = dma.done [#allocation6], 6144
    $region45: #{tpu_custom_call.1} parent=1 // pred_fallthru
      _
    // Predicated region
    $region46: #{tpu_custom_call.1} parent=1 // pred_check
      _
    $region47: #{tpu_custom_call.1} parent=1 // pred_check_branch
      %92 = sbr.rel (0) target = $region49
    $region48: #{tpu_custom_call.1} parent=1 // pred_region
      %94 = dma.done [#allocation6], 4096
    $region49: #{tpu_custom_call.1} parent=1 // pred_fallthru
      _
    // Predicated region
    $region50: #{tpu_custom_call.1} parent=1 // pred_check
      _
    $region51: #{tpu_custom_call.1} parent=1 // pred_check_branch
      %96 = sbr.rel (0) target = $region53
    $region52: #{tpu_custom_call.1} parent=1 // pred_region
      %98 = dma.done [#allocation9], 2048
    $region53: #{tpu_custom_call.1} parent=1 // pred_fallthru
      _
    %v99 = vld [vmem:[%s1] sm:$0xff]
    %v100 = vcvt.s32.f32 %v99
    %v101 = vmax.f32 %v100, 1.0
    %v102 = vld [vmem:[%s0] sm:$0xff]
    %v103 = vlaneseq
    %v104 = vand.u32 %v103, 127
    %v105 = vperm.slane %v102, 0
    %v106 = vlaneseq
    %v107 = vshrl.u32 %v106, 7
    %109 = vset.pattern.permute.xlu0 %v107
    %110 = vperm.xlu0 %109, %v105
    %v111 = vpop.permute.xlu0 %110
    %v112 = vperm.slane %v102, 1
    %v113 = vlaneseq
    %v114 = vshrl.u32 %v113, 7
    %116 = vset.pattern.permute.xlu0 %v114
    %117 = vperm.xlu0 %116, %v112
    %v118 = vpop.permute.xlu0 %117
    %v119 = vperm.slane %v102, 2
    %v120 = vlaneseq
    %v121 = vshrl.u32 %v120, 7
    %123 = vset.pattern.permute.xlu0 %v121
    %124 = vperm.xlu0 %123, %v119
    %v125 = vpop.permute.xlu0 %124
    %v126 = vperm.slane %v102, 3
    %v127 = vlaneseq
    %v128 = vshrl.u32 %v127, 7
    %130 = vset.pattern.permute.xlu0 %v128
    %131 = vperm.xlu0 %130, %v126
    %v132 = vpop.permute.xlu0 %131
    %v133 = vperm.slane %v102, 4
    %v134 = vlaneseq
    %v135 = vshrl.u32 %v134, 7
    %137 = vset.pattern.permute.xlu0 %v135
    %138 = vperm.xlu0 %137, %v133
    %v139 = vpop.permute.xlu0 %138
    %v140 = vperm.slane %v102, 5
    %v141 = vlaneseq
    %v142 = vshrl.u32 %v141, 7
    %144 = vset.pattern.permute.xlu0 %v142
    %145 = vperm.xlu0 %144, %v140
    %v146 = vpop.permute.xlu0 %145
    %v147 = vperm.slane %v102, 6
    %v148 = vlaneseq
    %v149 = vshrl.u32 %v148, 7
    %151 = vset.pattern.permute.xlu0 %v149
    %152 = vperm.xlu0 %151, %v147
    %v153 = vpop.permute.xlu0 %152
    %v154 = vperm.slane %v102, 7
    %v155 = vlaneseq
    %v156 = vshrl.u32 %v155, 7
    %158 = vset.pattern.permute.xlu0 %v156
    %159 = vperm.xlu0 %158, %v154
    %v160 = vpop.permute.xlu0 %159
    %vm161 = vcmp.eq.s32.totalorder %v104, %v111
    %vm162 = vcmp.eq.s32.totalorder %v104, %v118
    %vm163 = vcmp.eq.s32.totalorder %v104, %v125
    %vm164 = vcmp.eq.s32.totalorder %v104, %v132
    %vm165 = vcmp.eq.s32.totalorder %v104, %v139
    %vm166 = vcmp.eq.s32.totalorder %v104, %v146
    %vm167 = vcmp.eq.s32.totalorder %v104, %v153
    %vm168 = vcmp.eq.s32.totalorder %v104, %v160
    %v169 = vsel %vm161, 1, 0
    %v170 = vsel %vm162, 1, 0
    %v171 = vsel %vm163, 1, 0
    %v172 = vsel %vm164, 1, 0
    %v173 = vsel %vm165, 1, 0
    %v174 = vsel %vm166, 1, 0
    %v175 = vsel %vm167, 1, 0
    %v176 = vsel %vm168, 1, 0
    %v177 = vcvt.s32.f32 %v169
    %v178 = vcvt.s32.f32 %v170
    %v179 = vcvt.s32.f32 %v171
    %v180 = vcvt.s32.f32 %v172
    %v181 = vcvt.s32.f32 %v173
    %v182 = vcvt.s32.f32 %v174
    %v183 = vcvt.s32.f32 %v175
    %v184 = vcvt.s32.f32 %v176
    %v185 = vld [vmem:[#allocation2] sm:$0xff]
    %v186 = vld [vmem:[#allocation2 + $0x8] sm:$0xff]
    %v187 = vld [vmem:[#allocation2 + $0x10] sm:$0xff]
    %v188 = vld [vmem:[#allocation2 + $0x18] sm:$0xff]
    %v189 = vld [vmem:[#allocation2 + $0x20] sm:$0xff]
    %v190 = vld [vmem:[#allocation2 + $0x28] sm:$0xff]
    %v191 = vld [vmem:[#allocation2 + $0x30] sm:$0xff]
    %v192 = vld [vmem:[#allocation2 + $0x38] sm:$0xff]
    %v193 = vld [vmem:[#allocation2 + $0x40] sm:$0xff]
    %v194 = vld [vmem:[#allocation2 + $0x48] sm:$0xff]
    %v195 = vld [vmem:[#allocation2 + $0x50] sm:$0xff]
    %v196 = vld [vmem:[#allocation2 + $0x58] sm:$0xff]
    %v197 = vld [vmem:[#allocation2 + $0x60] sm:$0xff]
    %v198 = vld [vmem:[#allocation2 + $0x68] sm:$0xff]
    %v199 = vld [vmem:[#allocation2 + $0x70] sm:$0xff]
    %v200 = vld [vmem:[#allocation2 + $0x78] sm:$0xff]
    %201 = vmatpush.msra.mxu0 %v200
    %202 = vmatpush.msra.mxu0 %v199
    %203 = vmatpush.msra.mxu0 %v198
    %204 = vmatpush.msra.mxu0 %v197
    %205 = vmatpush.msra.mxu0 %v196
    %206 = vmatpush.msra.mxu0 %v195
    %207 = vmatpush.msra.mxu0 %v194
    %208 = vmatpush.msra.mxu0 %v193
    %209 = vmatpush.msra.mxu0 %v192
    %210 = vmatpush.msra.mxu0 %v191
    %211 = vmatpush.msra.mxu0 %v190
    %212 = vmatpush.msra.mxu0 %v189
    %213 = vmatpush.msra.mxu0 %v188
    %214 = vmatpush.msra.mxu0 %v187
    %215 = vmatpush.msra.mxu0 %v186
    %216 = vmatpush.msra.mxu0 %v185
    %217 = vmatmul.f32.gmra.mxu0 %v177
    %v218 = vpop.f32.mrf.mxu0
    %v219 = vadd.f32 0.0, %v218
    %220 = vmatmul.f32.gmra.mxu0 %v178
    %v221 = vpop.f32.mrf.mxu0
    %v222 = vadd.f32 0.0, %v221
    %223 = vmatmul.f32.gmra.mxu0 %v179
    %v224 = vpop.f32.mrf.mxu0
    %v225 = vadd.f32 0.0, %v224
    %226 = vmatmul.f32.gmra.mxu0 %v180
    %v227 = vpop.f32.mrf.mxu0
    %v228 = vadd.f32 0.0, %v227
    %229 = vmatmul.f32.gmra.mxu0 %v181
    %v230 = vpop.f32.mrf.mxu0
    %v231 = vadd.f32 0.0, %v230
    %232 = vmatmul.f32.gmra.mxu0 %v182
    %v233 = vpop.f32.mrf.mxu0
    %v234 = vadd.f32 0.0, %v233
    %235 = vmatmul.f32.gmra.mxu0 %v183
    %v236 = vpop.f32.mrf.mxu0
    %v237 = vadd.f32 0.0, %v236
    %238 = vmatmul.f32.gmra.mxu0 %v184
    %v239 = vpop.f32.mrf.mxu0
    %v240 = vadd.f32 0.0, %v239
    %241 = vdwg.mxu0
    %242 = vset.pattern.permute.xlu0 0
    %243 = vperm.xlu0 %242, %v99
    %v244 = vpop.permute.xlu0 %243
    %vm245 = vcmp.lt.s32.totalorder %v104, %v244
    %v246 = vsel %vm245, 1, 0
    %v247 = vcvt.s32.f32 %v246
    %v248 = vperm.slane %v247, 0
    %v249 = vlaneseq
    %v250 = vshrl.u32 %v249, 7
    %252 = vset.pattern.permute.xlu0 %v250
    %253 = vperm.xlu0 %252, %v248
    %v254 = vpop.permute.xlu0 %253
    %v255 = vperm.slane %v247, 1
    %v256 = vlaneseq
    %v257 = vshrl.u32 %v256, 7
    %259 = vset.pattern.permute.xlu0 %v257
    %260 = vperm.xlu0 %259, %v255
    %v261 = vpop.permute.xlu0 %260
    %v262 = vperm.slane %v247, 2
    %v263 = vlaneseq
    %v264 = vshrl.u32 %v263, 7
    %266 = vset.pattern.permute.xlu0 %v264
    %267 = vperm.xlu0 %266, %v262
    %v268 = vpop.permute.xlu0 %267
    %v269 = vperm.slane %v247, 3
    %v270 = vlaneseq
    %v271 = vshrl.u32 %v270, 7
    %273 = vset.pattern.permute.xlu0 %v271
    %274 = vperm.xlu0 %273, %v269
    %v275 = vpop.permute.xlu0 %274
    %v276 = vperm.slane %v247, 4
    %v277 = vlaneseq
    %v278 = vshrl.u32 %v277, 7
    %280 = vset.pattern.permute.xlu0 %v278
    %281 = vperm.xlu0 %280, %v276
    %v282 = vpop.permute.xlu0 %281
    %v283 = vperm.slane %v247, 5
    %v284 = vlaneseq
    %v285 = vshrl.u32 %v284, 7
    %287 = vset.pattern.permute.xlu0 %v285
    %288 = vperm.xlu0 %287, %v283
    %v289 = vpop.permute.xlu0 %288
    %v290 = vperm.slane %v247, 6
    %v291 = vlaneseq
    %v292 = vshrl.u32 %v291, 7
    %294 = vset.pattern.permute.xlu0 %v292
    %295 = vperm.xlu0 %294, %v290
    %v296 = vpop.permute.xlu0 %295
    %v297 = vperm.slane %v247, 7
    %v298 = vlaneseq
    %v299 = vshrl.u32 %v298, 7
    %301 = vset.pattern.permute.xlu0 %v299
    %302 = vperm.xlu0 %301, %v297
    %v303 = vpop.permute.xlu0 %302
    %v304 = vmul.f32 %v219, %v254
    %v305 = vmul.f32 %v222, %v261
    %v306 = vmul.f32 %v225, %v268
    %v307 = vmul.f32 %v228, %v275
    %v308 = vmul.f32 %v231, %v282
    %v309 = vmul.f32 %v234, %v289
    %v310 = vmul.f32 %v237, %v296
    %v311 = vmul.f32 %v240, %v303
    %v312 = vrot.slane %v304, 4
    %v313 = vadd.f32 %v304, %v312
    %v314 = vrot.slane %v313, 2
    %v315 = vadd.f32 %v313, %v314
    %v316 = vrot.slane %v315, 1
    %v317 = vadd.f32 %v315, %v316
    %v318 = vrot.slane %v305, 4
    %v319 = vadd.f32 %v305, %v318
    %v320 = vrot.slane %v319, 2
    %v321 = vadd.f32 %v319, %v320
    %v322 = vrot.slane %v321, 1
    %v323 = vadd.f32 %v321, %v322
    %v324 = vrot.slane %v306, 4
    %v325 = vadd.f32 %v306, %v324
    %v326 = vrot.slane %v325, 2
    %v327 = vadd.f32 %v325, %v326
    %v328 = vrot.slane %v327, 1
    %v329 = vadd.f32 %v327, %v328
    %v330 = vrot.slane %v307, 4
    %v331 = vadd.f32 %v307, %v330
    %v332 = vrot.slane %v331, 2
    %v333 = vadd.f32 %v331, %v332
    %v334 = vrot.slane %v333, 1
    %v335 = vadd.f32 %v333, %v334
    %v336 = vrot.slane %v308, 4
    %v337 = vadd.f32 %v308, %v336
    %v338 = vrot.slane %v337, 2
    %v339 = vadd.f32 %v337, %v338
    %v340 = vrot.slane %v339, 1
    %v341 = vadd.f32 %v339, %v340
    %v342 = vrot.slane %v309, 4
    %v343 = vadd.f32 %v309, %v342
    %v344 = vrot.slane %v343, 2
    %v345 = vadd.f32 %v343, %v344
    %v346 = vrot.slane %v345, 1
    %v347 = vadd.f32 %v345, %v346
    %v348 = vrot.slane %v310, 4
    %v349 = vadd.f32 %v310, %v348
    %v350 = vrot.slane %v349, 2
    %v351 = vadd.f32 %v349, %v350
    %v352 = vrot.slane %v351, 1
    %v353 = vadd.f32 %v351, %v352
    %v354 = vrot.slane %v311, 4
    %v355 = vadd.f32 %v311, %v354
    %v356 = vrot.slane %v355, 2
    %v357 = vadd.f32 %v355, %v356
    %v358 = vrot.slane %v357, 1
    %v359 = vadd.f32 %v357, %v358
    %361 = vset.pattern.permute.xlu0 0
    %362 = vperm.xlu0 %361, %v101
    %v363 = vpop.permute.xlu0 %362
    %v364 = vrot.slane %v363, 1
    %v365 = vrot.slane %v363, 2
    %v366 = vrot.slane %v363, 3
    %v367 = vrot.slane %v363, 4
    %v368 = vrot.slane %v363, 5
    %v369 = vrot.slane %v363, 6
    %v370 = vrot.slane %v363, 7
    %v379 = vrcp.pop %v363
    %v380 = vmul.f32 %v363, %v379
    %v381 = vsub.f32 1.0, %v380
    %v382 = vmul.f32 %v379, %v381
    %v383 = vadd.f32 %v379, %v382
    %vm384 = vweird.f32 %v363
    %vm385 = vweird.f32 %v379
    %vm386 = vmor %vm384, %vm385
    %v387 = vsel %vm386, %v379, %v383
    %v388 = vand.u32 2147483647, %v363
    %vm389 = vcmp.eq.f32.partialorder %v388, 8.507059e+37
    %v390 = vand.u32 %v363, 2147483648
    %v391 = vor.u32 1.1754944e-38, %v390
    %v392 = vsel %vm389, %v391, %v387
    %v393 = vmul.f32 %v317, %v392
    %v394 = vrcp.pop %v364
    %v395 = vmul.f32 %v364, %v394
    %v396 = vsub.f32 1.0, %v395
    %v397 = vmul.f32 %v394, %v396
    %v398 = vadd.f32 %v394, %v397
    %vm399 = vweird.f32 %v364
    %vm400 = vweird.f32 %v394
    %vm401 = vmor %vm399, %vm400
    %v402 = vsel %vm401, %v394, %v398
    %v403 = vand.u32 2147483647, %v364
    %vm404 = vcmp.eq.f32.partialorder %v403, 8.507059e+37
    %v405 = vand.u32 %v364, 2147483648
    %v406 = vor.u32 1.1754944e-38, %v405
    %v407 = vsel %vm404, %v406, %v402
    %v408 = vmul.f32 %v323, %v407
    %v409 = vrcp.pop %v365
    %v410 = vmul.f32 %v365, %v409
    %v411 = vsub.f32 1.0, %v410
    %v412 = vmul.f32 %v409, %v411
    %v413 = vadd.f32 %v409, %v412
    %vm414 = vweird.f32 %v365
    %vm415 = vweird.f32 %v409
    %vm416 = vmor %vm414, %vm415
    %v417 = vsel %vm416, %v409, %v413
    %v418 = vand.u32 2147483647, %v365
    %vm419 = vcmp.eq.f32.partialorder %v418, 8.507059e+37
    %v420 = vand.u32 %v365, 2147483648
    %v421 = vor.u32 1.1754944e-38, %v420
    %v422 = vsel %vm419, %v421, %v417
    %v423 = vmul.f32 %v329, %v422
    %v424 = vrcp.pop %v366
    %v425 = vmul.f32 %v366, %v424
    %v426 = vsub.f32 1.0, %v425
    %v427 = vmul.f32 %v424, %v426
    %v428 = vadd.f32 %v424, %v427
    %vm429 = vweird.f32 %v366
    %vm430 = vweird.f32 %v424
    %vm431 = vmor %vm429, %vm430
    %v432 = vsel %vm431, %v424, %v428
    %v433 = vand.u32 2147483647, %v366
    %vm434 = vcmp.eq.f32.partialorder %v433, 8.507059e+37
    %v435 = vand.u32 %v366, 2147483648
    %v436 = vor.u32 1.1754944e-38, %v435
    %v437 = vsel %vm434, %v436, %v432
    %v438 = vmul.f32 %v335, %v437
    %v439 = vrcp.pop %v367
    %v440 = vmul.f32 %v367, %v439
    %v441 = vsub.f32 1.0, %v440
    %v442 = vmul.f32 %v439, %v441
    %v443 = vadd.f32 %v439, %v442
    %vm444 = vweird.f32 %v367
    %vm445 = vweird.f32 %v439
    %vm446 = vmor %vm444, %vm445
    %v447 = vsel %vm446, %v439, %v443
    %v448 = vand.u32 2147483647, %v367
    %vm449 = vcmp.eq.f32.partialorder %v448, 8.507059e+37
    %v450 = vand.u32 %v367, 2147483648
    %v451 = vor.u32 1.1754944e-38, %v450
    %v452 = vsel %vm449, %v451, %v447
    %v453 = vmul.f32 %v341, %v452
    %v454 = vrcp.pop %v368
    %v455 = vmul.f32 %v368, %v454
    %v456 = vsub.f32 1.0, %v455
    %v457 = vmul.f32 %v454, %v456
    %v458 = vadd.f32 %v454, %v457
    %vm459 = vweird.f32 %v368
    %vm460 = vweird.f32 %v454
    %vm461 = vmor %vm459, %vm460
    %v462 = vsel %vm461, %v454, %v458
    %v463 = vand.u32 2147483647, %v368
    %vm464 = vcmp.eq.f32.partialorder %v463, 8.507059e+37
    %v465 = vand.u32 %v368, 2147483648
    %v466 = vor.u32 1.1754944e-38, %v465
    %v467 = vsel %vm464, %v466, %v462
    %v468 = vmul.f32 %v347, %v467
    %v469 = vrcp.pop %v369
    %v470 = vmul.f32 %v369, %v469
    %v471 = vsub.f32 1.0, %v470
    %v472 = vmul.f32 %v469, %v471
    %v473 = vadd.f32 %v469, %v472
    %vm474 = vweird.f32 %v369
    %vm475 = vweird.f32 %v469
    %vm476 = vmor %vm474, %vm475
    %v477 = vsel %vm476, %v469, %v473
    %v478 = vand.u32 2147483647, %v369
    %vm479 = vcmp.eq.f32.partialorder %v478, 8.507059e+37
    %v480 = vand.u32 %v369, 2147483648
    %v481 = vor.u32 1.1754944e-38, %v480
    %v482 = vsel %vm479, %v481, %v477
    %v483 = vmul.f32 %v353, %v482
    %v484 = vrcp.pop %v370
    %v485 = vmul.f32 %v370, %v484
    %v486 = vsub.f32 1.0, %v485
    %v487 = vmul.f32 %v484, %v486
    %v488 = vadd.f32 %v484, %v487
    %vm489 = vweird.f32 %v370
    %vm490 = vweird.f32 %v484
    %vm491 = vmor %vm489, %vm490
    %v492 = vsel %vm491, %v484, %v488
    %v493 = vand.u32 2147483647, %v370
    %vm494 = vcmp.eq.f32.partialorder %v493, 8.507059e+37
    %v495 = vand.u32 %v370, 2147483648
    %v496 = vor.u32 1.1754944e-38, %v495
    %v497 = vsel %vm494, %v496, %v492
    %v498 = vmul.f32 %v359, %v497
    %v499 = vld [vmem:[#allocation5] sm:$0xff]
    %v500 = vld [vmem:[#allocation5 + $0x8] sm:$0xff]
    %v501 = vld [vmem:[#allocation5 + $0x10] sm:$0xff]
    %v502 = vld [vmem:[#allocation5 + $0x18] sm:$0xff]
    %v503 = vld [vmem:[#allocation5 + $0x20] sm:$0xff]
    %v504 = vld [vmem:[#allocation5 + $0x28] sm:$0xff]
    %v505 = vld [vmem:[#allocation5 + $0x30] sm:$0xff]
    %v506 = vld [vmem:[#allocation5 + $0x38] sm:$0xff]
    %v507 = vld [vmem:[#allocation5 + $0x40] sm:$0xff]
    %v508 = vld [vmem:[#allocation5 + $0x48] sm:$0xff]
    %v509 = vld [vmem:[#allocation5 + $0x50] sm:$0xff]
    %v510 = vld [vmem:[#allocation5 + $0x58] sm:$0xff]
    %v511 = vld [vmem:[#allocation5 + $0x60] sm:$0xff]
    %v512 = vld [vmem:[#allocation5 + $0x68] sm:$0xff]
    %v513 = vld [vmem:[#allocation5 + $0x70] sm:$0xff]
    %v514 = vld [vmem:[#allocation5 + $0x78] sm:$0xff]
    %v515 = vld [vmem:[%s4] sm:$0x1]
    %v517 = vperm.slane %v515, 0
    %v527 = vrot.slane %v408, 7
    %vm528 = vcmask 1041409
    %v529 = vsel %vm528, %v527, %v393
    %v530 = vrot.slane %v423, 6
    %vm531 = vcmask 1042434
    %v532 = vsel %vm531, %v530, %v529
    %v533 = vrot.slane %v438, 5
    %vm534 = vcmask 1043459
    %v535 = vsel %vm534, %v533, %v532
    %v536 = vrot.slane %v453, 4
    %vm537 = vcmask 1044484
    %v538 = vsel %vm537, %v536, %v535
    %v539 = vrot.slane %v468, 3
    %vm540 = vcmask 1045509
    %v541 = vsel %vm540, %v539, %v538
    %v542 = vrot.slane %v483, 2
    %vm543 = vcmask 1046534
    %v544 = vsel %vm543, %v542, %v541
    %v545 = vrot.slane %v498, 1
    %vm546 = vcmask 1047559
    %v547 = vsel %vm546, %v545, %v544
    %549 = vmatpush.msra.mxu0 %v514
    %550 = vmatpush.msra.mxu0 %v513
    %551 = vmatpush.msra.mxu0 %v512
    %552 = vmatpush.msra.mxu0 %v511
    %553 = vmatpush.msra.mxu0 %v510
    %554 = vmatpush.msra.mxu0 %v509
    %555 = vmatpush.msra.mxu0 %v508
    %556 = vmatpush.msra.mxu0 %v507
    %557 = vmatpush.msra.mxu0 %v506
    %558 = vmatpush.msra.mxu0 %v505
    %559 = vmatpush.msra.mxu0 %v504
    %560 = vmatpush.msra.mxu0 %v503
    %561 = vmatpush.msra.mxu0 %v502
    %562 = vmatpush.msra.mxu0 %v501
    %563 = vmatpush.msra.mxu0 %v500
    %564 = vmatpush.msra.mxu0 %v499
    %565 = vmatmul.f32.gmra.mxu0 %v547
    %v566 = vpop.f32.mrf.mxu0
    %v567 = vadd.f32 %v517, %v566
    %568 = vdwg.mxu0
    %v569 = vmax.f32 %v567, 0.0
    %v570 = vld [vmem:[#allocation7] sm:$0xff]
    %v571 = vld [vmem:[#allocation7 + $0x8] sm:$0xff]
    %v572 = vld [vmem:[#allocation7 + $0x10] sm:$0xff]
    %v573 = vld [vmem:[#allocation7 + $0x18] sm:$0xff]
    %v574 = vld [vmem:[#allocation7 + $0x20] sm:$0xff]
    %v575 = vld [vmem:[#allocation7 + $0x28] sm:$0xff]
    %v576 = vld [vmem:[#allocation7 + $0x30] sm:$0xff]
    %v577 = vld [vmem:[#allocation7 + $0x38] sm:$0xff]
    %v578 = vld [vmem:[#allocation7 + $0x40] sm:$0xff]
    %v579 = vld [vmem:[#allocation7 + $0x48] sm:$0xff]
    %v580 = vld [vmem:[#allocation7 + $0x50] sm:$0xff]
    %v581 = vld [vmem:[#allocation7 + $0x58] sm:$0xff]
    %v582 = vld [vmem:[#allocation7 + $0x60] sm:$0xff]
    %v583 = vld [vmem:[#allocation7 + $0x68] sm:$0xff]
    %v584 = vld [vmem:[#allocation7 + $0x70] sm:$0xff]
    %v585 = vld [vmem:[#allocation7 + $0x78] sm:$0xff]
    %v586 = vld [vmem:[%s6] sm:$0x1]
    %v588 = vperm.slane %v586, 0
    %590 = vmatpush.msra.mxu0 %v585
    %591 = vmatpush.msra.mxu0 %v584
    %592 = vmatpush.msra.mxu0 %v583
    %593 = vmatpush.msra.mxu0 %v582
    %594 = vmatpush.msra.mxu0 %v581
    %595 = vmatpush.msra.mxu0 %v580
    %596 = vmatpush.msra.mxu0 %v579
    %597 = vmatpush.msra.mxu0 %v578
    %598 = vmatpush.msra.mxu0 %v577
    %599 = vmatpush.msra.mxu0 %v576
    %600 = vmatpush.msra.mxu0 %v575
    %601 = vmatpush.msra.mxu0 %v574
    %602 = vmatpush.msra.mxu0 %v573
    %603 = vmatpush.msra.mxu0 %v572
    %604 = vmatpush.msra.mxu0 %v571
    %605 = vmatpush.msra.mxu0 %v570
    %606 = vmatmul.f32.gmra.mxu0 %v569
    %v607 = vpop.f32.mrf.mxu0
    %v608 = vadd.f32 %v588, %v607
    %609 = vdwg.mxu0
    %v611 = vrot.slane %v608, 1
    %v612 = vrot.slane %v608, 2
    %v613 = vrot.slane %v608, 3
    %v614 = vrot.slane %v608, 4
    %v615 = vrot.slane %v608, 5
    %v616 = vrot.slane %v608, 6
    %v617 = vrot.slane %v608, 7
    %v618 = vperm.slane %v608, 0
    %v619 = vperm.slane %v611, 0
    %v620 = vperm.slane %v612, 0
    %v621 = vperm.slane %v613, 0
    %v622 = vperm.slane %v614, 0
    %v623 = vperm.slane %v615, 0
    %v624 = vperm.slane %v616, 0
    %v625 = vperm.slane %v617, 0
    %v634 = vmul.f32 %v219, %v618
    %v635 = vmul.f32 %v222, %v619
    %v636 = vmul.f32 %v225, %v620
    %v637 = vmul.f32 %v228, %v621
    %v638 = vmul.f32 %v231, %v622
    %v639 = vmul.f32 %v234, %v623
    %v640 = vmul.f32 %v237, %v624
    %v641 = vmul.f32 %v240, %v625
    %642 = vadd.xlane.f32.xlu0 %v634
    %v643 = vpop.xlane.xlu0 %642
    %644 = vadd.xlane.f32.xlu0 %v635
    %v645 = vpop.xlane.xlu0 %644
    %646 = vadd.xlane.f32.xlu0 %v636
    %v647 = vpop.xlane.xlu0 %646
    %648 = vadd.xlane.f32.xlu0 %v637
    %v649 = vpop.xlane.xlu0 %648
    %650 = vadd.xlane.f32.xlu0 %v638
    %v651 = vpop.xlane.xlu0 %650
    %652 = vadd.xlane.f32.xlu0 %v639
    %v653 = vpop.xlane.xlu0 %652
    %654 = vadd.xlane.f32.xlu0 %v640
    %v655 = vpop.xlane.xlu0 %654
    %656 = vadd.xlane.f32.xlu0 %v641
    %v657 = vpop.xlane.xlu0 %656
    %v666 = vperm.slane %v643, %v104
    %v667 = vperm.slane %v645, %v104
    %v668 = vperm.slane %v647, %v104
    %v669 = vperm.slane %v649, %v104
    %v670 = vperm.slane %v651, %v104
    %v671 = vperm.slane %v653, %v104
    %v672 = vperm.slane %v655, %v104
    %v673 = vperm.slane %v657, %v104
    %v674 = vsel %vm528, %v667, %v666
    %v675 = vsel %vm531, %v668, %v674
    %v676 = vsel %vm534, %v669, %v675
    %v677 = vsel %vm537, %v670, %v676
    %v678 = vsel %vm540, %v671, %v677
    %v679 = vsel %vm543, %v672, %v678
    %v680 = vsel %vm546, %v673, %v679
    %v682 = vsel %vm245, %v680, -1e+30
    %vm683 = vcmask 64512
    %v684 = vsel %vm683, %v682, -inf
    %685 = vmax.xlane.f32.xlu0 %v684
    %v686 = vpop.xlane.xlu0 %685
    %v687 = vsub.f32 %v682, %v686
    %v688 = vmul.f32 %v687, 1.442695
    %v689 = vpow.pop %v688
    %v690 = vsel %vm683, %v689, 0.0
    %691 = vadd.xlane.f32.xlu0 %v690
    %v692 = vpop.xlane.xlu0 %691
    %v693 = vrcp.pop %v692
    %v694 = vmul.f32 %v692, %v693
    %v695 = vsub.f32 1.0, %v694
    %v696 = vmul.f32 %v693, %v695
    %v697 = vadd.f32 %v693, %v696
    %vm698 = vweird.f32 %v692
    %vm699 = vweird.f32 %v693
    %vm700 = vmor %vm698, %vm699
    %v701 = vsel %vm700, %v693, %v697
    %v702 = vand.u32 2147483647, %v692
    %vm703 = vcmp.eq.f32.partialorder %v702, 8.507059e+37
    %v704 = vand.u32 %v692, 2147483648
    %v705 = vor.u32 1.1754944e-38, %v704
    %v706 = vsel %vm703, %v705, %v701
    %v707 = vmul.f32 %v689, %v706
    %s708 = scalar_lea.vmem [#allocation5], 128
    %v709 = vld [vmem:[%s708] sm:$0xff]
    %v710 = vld [vmem:[%s708 + $0x8] sm:$0xff]
    %v711 = vld [vmem:[%s708 + $0x10] sm:$0xff]
    %v712 = vld [vmem:[%s708 + $0x18] sm:$0xff]
    %v713 = vld [vmem:[%s708 + $0x20] sm:$0xff]
    %v714 = vld [vmem:[%s708 + $0x28] sm:$0xff]
    %v715 = vld [vmem:[%s708 + $0x30] sm:$0xff]
    %v716 = vld [vmem:[%s708 + $0x38] sm:$0xff]
    %v717 = vld [vmem:[%s708 + $0x40] sm:$0xff]
    %v718 = vld [vmem:[%s708 + $0x48] sm:$0xff]
    %v719 = vld [vmem:[%s708 + $0x50] sm:$0xff]
    %v720 = vld [vmem:[%s708 + $0x58] sm:$0xff]
    %v721 = vld [vmem:[%s708 + $0x60] sm:$0xff]
    %v722 = vld [vmem:[%s708 + $0x68] sm:$0xff]
    %v723 = vld [vmem:[%s708 + $0x70] sm:$0xff]
    %v724 = vld [vmem:[%s708 + $0x78] sm:$0xff]
    %s725 = scalar_lea.vmem %s4, 1
    %v726 = vld [vmem:[%s725] sm:$0x1]
    %v728 = vperm.slane %v726, 0
    %730 = vmatpush.msra.mxu0 %v724
    %731 = vmatpush.msra.mxu0 %v723
    %732 = vmatpush.msra.mxu0 %v722
    %733 = vmatpush.msra.mxu0 %v721
    %734 = vmatpush.msra.mxu0 %v720
    %735 = vmatpush.msra.mxu0 %v719
    %736 = vmatpush.msra.mxu0 %v718
    %737 = vmatpush.msra.mxu0 %v717
    %738 = vmatpush.msra.mxu0 %v716
    %739 = vmatpush.msra.mxu0 %v715
    %740 = vmatpush.msra.mxu0 %v714
    %741 = vmatpush.msra.mxu0 %v713
    %742 = vmatpush.msra.mxu0 %v712
    %743 = vmatpush.msra.mxu0 %v711
    %744 = vmatpush.msra.mxu0 %v710
    %745 = vmatpush.msra.mxu0 %v709
    %746 = vmatmul.f32.gmra.mxu0 %v219
    %v747 = vpop.f32.mrf.mxu0
    %v748 = vadd.f32 %v728, %v747
    %749 = vmatmul.f32.gmra.mxu0 %v222
    %v750 = vpop.f32.mrf.mxu0
    %v751 = vadd.f32 %v728, %v750
    %752 = vmatmul.f32.gmra.mxu0 %v225
    %v753 = vpop.f32.mrf.mxu0
    %v754 = vadd.f32 %v728, %v753
    %755 = vmatmul.f32.gmra.mxu0 %v228
    %v756 = vpop.f32.mrf.mxu0
    %v757 = vadd.f32 %v728, %v756
    %758 = vmatmul.f32.gmra.mxu0 %v231
    %v759 = vpop.f32.mrf.mxu0
    %v760 = vadd.f32 %v728, %v759
    %761 = vmatmul.f32.gmra.mxu0 %v234
    %v762 = vpop.f32.mrf.mxu0
    %v763 = vadd.f32 %v728, %v762
    %764 = vmatmul.f32.gmra.mxu0 %v237
    %v765 = vpop.f32.mrf.mxu0
    %v766 = vadd.f32 %v728, %v765
    %767 = vmatmul.f32.gmra.mxu0 %v240
    %v768 = vpop.f32.mrf.mxu0
    %v769 = vadd.f32 %v728, %v768
    %770 = vdwg.mxu0
    %v771 = vmax.f32 %v748, 0.0
    %v772 = vmax.f32 %v751, 0.0
    %v773 = vmax.f32 %v754, 0.0
    %v774 = vmax.f32 %v757, 0.0
    %v775 = vmax.f32 %v760, 0.0
    %v776 = vmax.f32 %v763, 0.0
    %v777 = vmax.f32 %v766, 0.0
    %v778 = vmax.f32 %v769, 0.0
    %v779 = vperm.slane %v707, 0
    %v780 = vlaneseq
    %v781 = vshrl.u32 %v780, 7
    %783 = vset.pattern.permute.xlu0 %v781
    %784 = vperm.xlu0 %783, %v779
    %v785 = vpop.permute.xlu0 %784
    %v786 = vperm.slane %v707, 1
    %v787 = vlaneseq
    %v788 = vshrl.u32 %v787, 7
    %790 = vset.pattern.permute.xlu0 %v788
    %791 = vperm.xlu0 %790, %v786
    %v792 = vpop.permute.xlu0 %791
    %v793 = vperm.slane %v707, 2
    %v794 = vlaneseq
    %v795 = vshrl.u32 %v794, 7
    %797 = vset.pattern.permute.xlu0 %v795
    %798 = vperm.xlu0 %797, %v793
    %v799 = vpop.permute.xlu0 %798
    %v800 = vperm.slane %v707, 3
    %v801 = vlaneseq
    %v802 = vshrl.u32 %v801, 7
    %804 = vset.pattern.permute.xlu0 %v802
    %805 = vperm.xlu0 %804, %v800
    %v806 = vpop.permute.xlu0 %805
    %v807 = vperm.slane %v707, 4
    %v808 = vlaneseq
    %v809 = vshrl.u32 %v808, 7
    %811 = vset.pattern.permute.xlu0 %v809
    %812 = vperm.xlu0 %811, %v807
    %v813 = vpop.permute.xlu0 %812
    %v814 = vperm.slane %v707, 5
    %v815 = vlaneseq
    %v816 = vshrl.u32 %v815, 7
    %818 = vset.pattern.permute.xlu0 %v816
    %819 = vperm.xlu0 %818, %v814
    %v820 = vpop.permute.xlu0 %819
    %v821 = vperm.slane %v707, 6
    %v822 = vlaneseq
    %v823 = vshrl.u32 %v822, 7
    %825 = vset.pattern.permute.xlu0 %v823
    %826 = vperm.xlu0 %825, %v821
    %v827 = vpop.permute.xlu0 %826
    %v828 = vperm.slane %v707, 7
    %v829 = vlaneseq
    %v830 = vshrl.u32 %v829, 7
    %832 = vset.pattern.permute.xlu0 %v830
    %833 = vperm.xlu0 %832, %v828
    %v834 = vpop.permute.xlu0 %833
    %v835 = vmul.f32 %v785, %v771
    %v836 = vmul.f32 %v792, %v772
    %v837 = vmul.f32 %v799, %v773
    %v838 = vmul.f32 %v806, %v774
    %v839 = vmul.f32 %v813, %v775
    %v840 = vmul.f32 %v820, %v776
    %v841 = vmul.f32 %v827, %v777
    %v842 = vmul.f32 %v834, %v778
    %v843 = vrot.slane %v835, 4
    %v844 = vadd.f32 %v835, %v843
    %v845 = vrot.slane %v844, 2
    %v846 = vadd.f32 %v844, %v845
    %v847 = vrot.slane %v846, 1
    %v848 = vadd.f32 %v846, %v847
    %v849 = vrot.slane %v836, 4
    %v850 = vadd.f32 %v836, %v849
    %v851 = vrot.slane %v850, 2
    %v852 = vadd.f32 %v850, %v851
    %v853 = vrot.slane %v852, 1
    %v854 = vadd.f32 %v852, %v853
    %v855 = vrot.slane %v837, 4
    %v856 = vadd.f32 %v837, %v855
    %v857 = vrot.slane %v856, 2
    %v858 = vadd.f32 %v856, %v857
    %v859 = vrot.slane %v858, 1
    %v860 = vadd.f32 %v858, %v859
    %v861 = vrot.slane %v838, 4
    %v862 = vadd.f32 %v838, %v861
    %v863 = vrot.slane %v862, 2
    %v864 = vadd.f32 %v862, %v863
    %v865 = vrot.slane %v864, 1
    %v866 = vadd.f32 %v864, %v865
    %v867 = vrot.slane %v839, 4
    %v868 = vadd.f32 %v839, %v867
    %v869 = vrot.slane %v868, 2
    %v870 = vadd.f32 %v868, %v869
    %v871 = vrot.slane %v870, 1
    %v872 = vadd.f32 %v870, %v871
    %v873 = vrot.slane %v840, 4
    %v874 = vadd.f32 %v840, %v873
    %v875 = vrot.slane %v874, 2
    %v876 = vadd.f32 %v874, %v875
    %v877 = vrot.slane %v876, 1
    %v878 = vadd.f32 %v876, %v877
    %v879 = vrot.slane %v841, 4
    %v880 = vadd.f32 %v841, %v879
    %v881 = vrot.slane %v880, 2
    %v882 = vadd.f32 %v880, %v881
    %v883 = vrot.slane %v882, 1
    %v884 = vadd.f32 %v882, %v883
    %v885 = vrot.slane %v842, 4
    %v886 = vadd.f32 %v842, %v885
    %v887 = vrot.slane %v886, 2
    %v888 = vadd.f32 %v886, %v887
    %v889 = vrot.slane %v888, 1
    %v890 = vadd.f32 %v888, %v889
    %s891 = scalar_lea.vmem [#allocation7], 128
    %v892 = vld [vmem:[%s891] sm:$0xff]
    %v893 = vld [vmem:[%s891 + $0x8] sm:$0xff]
    %v894 = vld [vmem:[%s891 + $0x10] sm:$0xff]
    %v895 = vld [vmem:[%s891 + $0x18] sm:$0xff]
    %v896 = vld [vmem:[%s891 + $0x20] sm:$0xff]
    %v897 = vld [vmem:[%s891 + $0x28] sm:$0xff]
    %v898 = vld [vmem:[%s891 + $0x30] sm:$0xff]
    %v899 = vld [vmem:[%s891 + $0x38] sm:$0xff]
    %v900 = vld [vmem:[%s891 + $0x40] sm:$0xff]
    %v901 = vld [vmem:[%s891 + $0x48] sm:$0xff]
    %v902 = vld [vmem:[%s891 + $0x50] sm:$0xff]
    %v903 = vld [vmem:[%s891 + $0x58] sm:$0xff]
    %v904 = vld [vmem:[%s891 + $0x60] sm:$0xff]
    %v905 = vld [vmem:[%s891 + $0x68] sm:$0xff]
    %v906 = vld [vmem:[%s891 + $0x70] sm:$0xff]
    %v907 = vld [vmem:[%s891 + $0x78] sm:$0xff]
    %s908 = scalar_lea.vmem %s6, 1
    %v909 = vld [vmem:[%s908] sm:$0x1]
    %v911 = vperm.slane %v909, 0
    %v921 = vsel %vm528, %v854, %v848
    %v922 = vsel %vm531, %v860, %v921
    %v923 = vsel %vm534, %v866, %v922
    %v924 = vsel %vm537, %v872, %v923
    %v925 = vsel %vm540, %v878, %v924
    %v926 = vsel %vm543, %v884, %v925
    %v927 = vsel %vm546, %v890, %v926
    %929 = vmatpush.msra.mxu0 %v907
    %930 = vmatpush.msra.mxu0 %v906
    %931 = vmatpush.msra.mxu0 %v905
    %932 = vmatpush.msra.mxu0 %v904
    %933 = vmatpush.msra.mxu0 %v903
    %934 = vmatpush.msra.mxu0 %v902
    %935 = vmatpush.msra.mxu0 %v901
    %936 = vmatpush.msra.mxu0 %v900
    %937 = vmatpush.msra.mxu0 %v899
    %938 = vmatpush.msra.mxu0 %v898
    %939 = vmatpush.msra.mxu0 %v897
    %940 = vmatpush.msra.mxu0 %v896
    %941 = vmatpush.msra.mxu0 %v895
    %942 = vmatpush.msra.mxu0 %v894
    %943 = vmatpush.msra.mxu0 %v893
    %944 = vmatpush.msra.mxu0 %v892
    %945 = vmatmul.f32.gmra.mxu0 %v927
    %v946 = vpop.f32.mrf.mxu0
    %v947 = vadd.f32 %v911, %v946
    %948 = vdwg.mxu0
    %s949 = scalar_lea.vmem [#allocation5], 256
    %v950 = vld [vmem:[%s949] sm:$0xff]
    %v951 = vld [vmem:[%s949 + $0x8] sm:$0xff]
    %v952 = vld [vmem:[%s949 + $0x10] sm:$0xff]
    %v953 = vld [vmem:[%s949 + $0x18] sm:$0xff]
    %v954 = vld [vmem:[%s949 + $0x20] sm:$0xff]
    %v955 = vld [vmem:[%s949 + $0x28] sm:$0xff]
    %v956 = vld [vmem:[%s949 + $0x30] sm:$0xff]
    %v957 = vld [vmem:[%s949 + $0x38] sm:$0xff]
    %v958 = vld [vmem:[%s949 + $0x40] sm:$0xff]
    %v959 = vld [vmem:[%s949 + $0x48] sm:$0xff]
    %v960 = vld [vmem:[%s949 + $0x50] sm:$0xff]
    %v961 = vld [vmem:[%s949 + $0x58] sm:$0xff]
    %v962 = vld [vmem:[%s949 + $0x60] sm:$0xff]
    %v963 = vld [vmem:[%s949 + $0x68] sm:$0xff]
    %v964 = vld [vmem:[%s949 + $0x70] sm:$0xff]
    %v965 = vld [vmem:[%s949 + $0x78] sm:$0xff]
    %s966 = scalar_lea.vmem %s4, 2
    %v967 = vld [vmem:[%s966] sm:$0x1]
    %v969 = vperm.slane %v967, 0
    %971 = vmatpush.msra.mxu0 %v965
    %972 = vmatpush.msra.mxu0 %v964
    %973 = vmatpush.msra.mxu0 %v963
    %974 = vmatpush.msra.mxu0 %v962
    %975 = vmatpush.msra.mxu0 %v961
    %976 = vmatpush.msra.mxu0 %v960
    %977 = vmatpush.msra.mxu0 %v959
    %978 = vmatpush.msra.mxu0 %v958
    %979 = vmatpush.msra.mxu0 %v957
    %980 = vmatpush.msra.mxu0 %v956
    %981 = vmatpush.msra.mxu0 %v955
    %982 = vmatpush.msra.mxu0 %v954
    %983 = vmatpush.msra.mxu0 %v953
    %984 = vmatpush.msra.mxu0 %v952
    %985 = vmatpush.msra.mxu0 %v951
    %986 = vmatpush.msra.mxu0 %v950
    %987 = vmatmul.f32.gmra.mxu0 %v947
    %v988 = vpop.f32.mrf.mxu0
    %v989 = vadd.f32 %v969, %v988
    %990 = vdwg.mxu0
    %v991 = vmax.f32 %v989, 0.0
    %v992 = vld [vmem:[#allocation8] sm:$0xff]
    %v993 = vld [vmem:[#allocation8 + $0x8] sm:$0xff]
    %v994 = vld [vmem:[#allocation8 + $0x10] sm:$0xff]
    %v995 = vld [vmem:[#allocation8 + $0x18] sm:$0xff]
    %v996 = vld [vmem:[#allocation8 + $0x20] sm:$0xff]
    %v997 = vld [vmem:[#allocation8 + $0x28] sm:$0xff]
    %v998 = vld [vmem:[#allocation8 + $0x30] sm:$0xff]
    %v999 = vld [vmem:[#allocation8 + $0x38] sm:$0xff]
    %v1000 = vld [vmem:[#allocation8 + $0x40] sm:$0xff]
    %v1001 = vld [vmem:[#allocation8 + $0x48] sm:$0xff]
    %v1002 = vld [vmem:[#allocation8 + $0x50] sm:$0xff]
    %v1003 = vld [vmem:[#allocation8 + $0x58] sm:$0xff]
    %v1004 = vld [vmem:[#allocation8 + $0x60] sm:$0xff]
    %v1005 = vld [vmem:[#allocation8 + $0x68] sm:$0xff]
    %v1006 = vld [vmem:[#allocation8 + $0x70] sm:$0xff]
    %v1007 = vld [vmem:[#allocation8 + $0x78] sm:$0xff]
    %v1008 = vld [vmem:[%s8] sm:$0x1]
    %v1010 = vperm.slane %v1008, 0
    %1012 = vmatpush.msra.mxu0 %v1007
    %1013 = vmatpush.msra.mxu0 %v1006
    %1014 = vmatpush.msra.mxu0 %v1005
    %1015 = vmatpush.msra.mxu0 %v1004
    %1016 = vmatpush.msra.mxu0 %v1003
    %1017 = vmatpush.msra.mxu0 %v1002
    %1018 = vmatpush.msra.mxu0 %v1001
    %1019 = vmatpush.msra.mxu0 %v1000
    %1020 = vmatpush.msra.mxu0 %v999
    %1021 = vmatpush.msra.mxu0 %v998
    %1022 = vmatpush.msra.mxu0 %v997
    %1023 = vmatpush.msra.mxu0 %v996
    %1024 = vmatpush.msra.mxu0 %v995
    %1025 = vmatpush.msra.mxu0 %v994
    %1026 = vmatpush.msra.mxu0 %v993
    %1027 = vmatpush.msra.mxu0 %v992
    %1028 = vmatmul.f32.gmra.mxu0 %v991
    %v1029 = vpop.f32.mrf.mxu0
    %v1030 = vadd.f32 %v1010, %v1029
    %1031 = vdwg.mxu0
    %1032 = vst [vmem:[#allocation10] sm:$0xff] %v1030
    %1033 = vst.msk [vmem:[#allocation11] sm:$0xff] %vm683, %v707
    // Predicated region
    $region54: #{tpu_custom_call.1} parent=1 // pred_check
      _
    $region55: #{tpu_custom_call.1} parent=1 // pred_check_branch
      %1035 = sbr.rel (0) target = $region57
    $region56: #{tpu_custom_call.1} parent=1 // pred_region
      %1037 = vsyncadd [#allocation4], 0
      %s1039 = sshll.u32 [#allocation10], 4
      %s1040 = int_to_ptr.vmem [resolvable:$true] %s1039
      %s1041 = sshll.u32 %s9, 4
      %s1042 = int_to_ptr.hbm [resolvable:$true] %s1041
      %1044 = dma.vmem_to_hbm [thread:$0]  %s1040, 128, %s1042, [#allocation4]
    $region57: #{tpu_custom_call.1} parent=1 // pred_fallthru
      _
    // Predicated region
    $region58: #{tpu_custom_call.1} parent=1 // pred_check
      _
    $region59: #{tpu_custom_call.1} parent=1 // pred_check_branch
      %1046 = sbr.rel (0) target = $region61
    $region60: #{tpu_custom_call.1} parent=1 // pred_region
      %1048 = vsyncadd [#allocation12], 0
      %s1050 = sshll.u32 [#allocation11], 4
      %s1051 = int_to_ptr.vmem [resolvable:$true] %s1050
      %s1052 = sshll.u32 %s10, 4
      %s1053 = int_to_ptr.hbm [resolvable:$true] %s1052
      %1055 = dma.vmem_to_hbm [thread:$0]  %s1051, 128, %s1053, [#allocation12]
    $region61: #{tpu_custom_call.1} parent=1 // pred_fallthru
      _
    // Predicated region
    $region62: #{tpu_custom_call.1} parent=1 // pred_check
      _
    $region63: #{tpu_custom_call.1} parent=1 // pred_check_branch
      %1057 = sbr.rel (0) target = $region65
    $region64: #{tpu_custom_call.1} parent=1 // pred_region
      %1059 = dma.done [#allocation4], 128
    $region65: #{tpu_custom_call.1} parent=1 // pred_fallthru
      _
    // Predicated region
    $region66: #{tpu_custom_call.1} parent=1 // pred_check
      _
    $region67: #{tpu_custom_call.1} parent=1 // pred_check_branch
      %1061 = sbr.rel (0) target = $region69
    $region68: #{tpu_custom_call.1} parent=1 // pred_region
      %1063 = dma.done [#allocation12], 128
    $region69: #{tpu_custom_call.1} parent=1 // pred_fallthru
      _
    %1064 = vsyncpa [#allocation3], 1
    %1065 = vsyncpa [#allocation6], 1
    %1066 = vsyncpa [#allocation9], 1
    %1067 = vsyncpa [#allocation4], 1
    %1068 = vsyncpa [#allocation12], 1

</llo_original>
